<compile_context>
chip_gen: v7x
topology: tpu7x:2x2x1
jax: 0.10.0
libtpu: 0.0.40
codegen_flags: <defaults>
</compile_context>

<pallas_src>
import functools
from typing import NamedTuple

import jax
import jax.numpy as jnp
from jax.experimental import pallas as pl
from jax.experimental.pallas import tpu as pltpu

LANE = 128
SUBLANE = 8


def _round_up(n, m):
    return ((n + m - 1) // m) * m


def _cdiv(a, b):
    return -(-a // b)


def _softplus(h):
    # Numerically stable softplus (matches torch.nn.Softplus to fp32 tolerance).
    return jnp.maximum(h, 0.0) + jnp.log1p(jnp.exp(-jnp.abs(h)))


def _vmem_cap_bytes():
    # Leave headroom below physical VMEM (v7x: 64 MiB/TC, v5e/v6e: 128 MiB).
    try:
        return int(pltpu.get_tpu_info().vmem_capacity_bytes * 3 // 4)
    except Exception:
        return 48 * 1024 * 1024


# ----------------------------------------------------------------------------
# Kernel
# ----------------------------------------------------------------------------
def norm_encoder_kernel(x_ref, w1_ref, b1_ref, wh_ref, bh_ref,
                        loc_ref, scale_ref, *, x_pad):
    # fc1 + softplus (MXU matmul with f32 accumulation; softplus in f32).
    h = jnp.dot(x_ref[...], w1_ref[...],
                preferred_element_type=jnp.float32) + b1_ref[...]
    h = _softplus(h)

    # Fused heads: one GEMM over [Hp, 2*Xp]. loc is lanes [0, Xp), scale is
    # lanes [Xp, 2*Xp); both static slices are 128-lane aligned.
    y = jnp.dot(h.astype(wh_ref.dtype), wh_ref[...],
                preferred_element_type=jnp.float32) + bh_ref[...]
    loc_ref[...] = y[:, :x_pad].astype(loc_ref.dtype)
    scale_ref[...] = jnp.exp(y[:, x_pad:]).astype(scale_ref.dtype)


# ----------------------------------------------------------------------------
# Parameter packing (done once, outside the per-call path)
# ----------------------------------------------------------------------------
class PreparedParams(NamedTuple):
    w1: jax.Array   # [Kp, Hp]      matmul dtype
    b1: jax.Array   # [1, Hp]       f32
    wh: jax.Array   # [Hp, 2 * Xp]  matmul dtype  (loc half | scale half)
    bh: jax.Array   # [1, 2 * Xp]   f32
    item_size: int
    hidden_dim: int
    x_dim: int


def prepare_params(params, *, matmul_dtype=jnp.bfloat16):
    """Pad / fuse / cast weights once at init.

    `params` holds transposed weights ([in_features, out_features]).
    Zero padding is exact: padded x columns multiply zero w1 rows; padded
    hidden lanes (softplus(0) != 0) multiply all-zero rows of the fused head
    weight, contributing 0 to loc / log-scale.
    """
    item_size, hidden_dim = params["w1"].shape
    x_dim = params["w21"].shape[1]
    kp = _round_up(item_size, LANE)
    hp = _round_up(hidden_dim, LANE)
    xp = _round_up(x_dim, LANE)

    f32 = jnp.float32
    w1 = jnp.zeros((kp, hp), f32).at[:item_size, :hidden_dim].set(
        jnp.asarray(params["w1"], f32))
    b1 = jnp.zeros((1, hp), f32).at[:, :hidden_dim].set(
        jnp.asarray(params["b1"], f32).reshape(1, -1))

    wh = jnp.zeros((hp, 2 * xp), f32)
    wh = wh.at[:hidden_dim, :x_dim].set(jnp.asarray(params["w21"], f32))
    wh = wh.at[:hidden_dim, xp:xp + x_dim].set(jnp.asarray(params["w22"], f32))
    bh = jnp.zeros((1, 2 * xp), f32)
    bh = bh.at[:, :x_dim].set(jnp.asarray(params["b21"], f32).reshape(1, -1))
    bh = bh.at[:, xp:xp + x_dim].set(jnp.asarray(params["b22"], f32).reshape(1, -1))

    return PreparedParams(
        w1=w1.astype(matmul_dtype), b1=b1,
        wh=wh.astype(matmul_dtype), bh=bh,
        item_size=item_size, hidden_dim=hidden_dim, x_dim=x_dim)


# ----------------------------------------------------------------------------
# Wrapper
# ----------------------------------------------------------------------------
def norm_encoder(x, prepared: PreparedParams, *, tb=None, out_dtype=jnp.float32):
    """x: [B, item_size]. Returns (x_loc [B, x_dim], x_scale [B, x_dim])."""
    B, item_size = x.shape
    assert item_size == prepared.item_size, "x feature dim mismatch"
    kp, hp = prepared.w1.shape
    two_xp = prepared.wh.shape[1]
    xp_dim = two_xp // 2
    x_dim = prepared.x_dim
    mm_dtype = prepared.w1.dtype

    # Batch tile: >=2 grid steps (so v7x can use both TensorCores), <=512 rows
    # per tile, minimal batch over-padding.
    if tb is None:
        n_steps = max(2, _cdiv(B, 512))
        tb = min(512, _round_up(_cdiv(B, n_steps), SUBLANE))
    bp = _round_up(B, tb)
    grid = (bp // tb,)

    # Only the activation is padded per call (it changes every call anyway).
    x_pad = jnp.zeros((bp, kp), mm_dtype).at[:B, :item_size].set(x.astype(mm_dtype))

    # VMEM budget: double-buffered x / loc / scale tiles, (conservatively)
    # double-buffered resident weights, plus f32 intermediates; with margin,
    # capped below physical VMEM.
    mm_b = jnp.dtype(mm_dtype).itemsize
    out_b = jnp.dtype(out_dtype).itemsize
    est = (2 * tb * kp * mm_b                       # x tiles
           + 2 * 2 * tb * xp_dim * out_b            # loc + scale tiles
           + 2 * (kp * hp * mm_b + hp * 4)          # w1 / b1
           + 2 * (hp * two_xp * mm_b + two_xp * 4)  # wh / bh
           + 2 * tb * (hp + two_xp) * 4)            # h / y intermediates
    vmem_limit = int(max(16 << 20, min(est * 3 // 2 + (2 << 20),
                                       _vmem_cap_bytes())))

    def full(arr):
        return pl.BlockSpec(arr.shape, lambda i: (0,) * arr.ndim)

    kernel = functools.partial(norm_encoder_kernel, x_pad=xp_dim)
    loc_p, scale_p = pl.pallas_call(
        kernel,
        out_shape=(jax.ShapeDtypeStruct((bp, xp_dim), out_dtype),
                   jax.ShapeDtypeStruct((bp, xp_dim), out_dtype)),
        grid_spec=pltpu.PrefetchScalarGridSpec(
            num_scalar_prefetch=0,
            grid=grid,
            in_specs=[
                pl.BlockSpec((tb, kp), lambda i: (i, 0)),   # x (batch-tiled)
                full(prepared.w1),                          # fc1 weight (resident)
                full(prepared.b1),                          # fc1 bias
                full(prepared.wh),                          # fused head weight
                full(prepared.bh),                          # fused head bias
            ],
            out_specs=[
                pl.BlockSpec((tb, xp_dim), lambda i: (i, 0)),   # loc (lane-dense)
                pl.BlockSpec((tb, xp_dim), lambda i: (i, 0)),   # scale (lane-dense)
            ],
        ),
        compiler_params=pltpu.CompilerParams(
            dimension_semantics=("parallel",),
            vmem_limit_bytes=vmem_limit,
        ),
    )(x_pad, prepared.w1, prepared.b1, prepared.wh, prepared.bh)

    return loc_p[:B, :x_dim], scale_p[:B, :x_dim]


# ----------------------------------------------------------------------------
# Synthetic init + pure-JAX reference
# ----------------------------------------------------------------------------
def init_params(key, item_size, x_dim, hidden_dim):
    """Deterministic synthetic init (Linear-like uniform bounds).

    Weights are stored transposed vs. torch ([in_features, out_features])."""
    ks = jax.random.split(key, 6)

    def lin(kw, kb, fan_in, fan_out):
        bound = 1.0 / jnp.sqrt(fan_in)
        w = jax.random.uniform(kw, (fan_in, fan_out), jnp.float32, -bound, bound)
        b = jax.random.uniform(kb, (1, fan_out), jnp.float32, -bound, bound)
        return w, b

    w1, b1 = lin(ks[0], ks[1], item_size, hidden_dim)
    w21, b21 = lin(ks[2], ks[3], hidden_dim, x_dim)
    w22, b22 = lin(ks[4], ks[5], hidden_dim, x_dim)
    return {"w1": w1, "b1": b1, "w21": w21, "b21": b21, "w22": w22, "b22": b22}


def reference(x, p):
    h = jax.nn.softplus(x @ p["w1"] + p["b1"])
    return h @ p["w21"] + p["b21"], jnp.exp(h @ p["w22"] + p["b22"])


if __name__ == "__main__":
    batch, item_size, x_dim, hidden_dim = 16, 24, 4, 32

    key = jax.random.PRNGKey(0)
    kx, kp = jax.random.split(key)
    x = jax.random.normal(kx, (batch, item_size), jnp.float32)
    params = init_params(kp, item_size, x_dim, hidden_dim)
    ref_loc, ref_scale = reference(x, params)

    # Exact f32 path (validation).
    prep_f32 = prepare_params(params, matmul_dtype=jnp.float32)
    loc, scale = jax.block_until_ready(norm_encoder(x, prep_f32))
    assert loc.shape == (batch, x_dim) and scale.shape == (batch, x_dim)
    assert jnp.allclose(loc, ref_loc, atol=1e-5, rtol=1e-5)
    assert jnp.allclose(scale, ref_scale, atol=1e-5, rtol=1e-5)

    # Production path: bf16 matmul inputs (default), f32 accumulation/output.
    prep_bf16 = prepare_params(params)
    loc16, scale16 = jax.block_until_ready(norm_encoder(x, prep_bf16))
    assert jnp.allclose(loc16, ref_loc, atol=5e-2, rtol=5e-2)
    assert jnp.allclose(scale16, ref_scale, atol=5e-2, rtol=5e-2)

    print("KERNEL_OK")
</pallas_src>

<mosaic_0001>
module attributes {stable_mosaic.version = 11 : i64} {
  func.func @norm_encoder_kernel(%arg0: i32, %arg1: memref<8x128xf32, #tpu.memory_space<vmem>>, %arg2: memref<128x128xf32, #tpu.memory_space<vmem>>, %arg3: memref<1x128xf32, #tpu.memory_space<vmem>>, %arg4: memref<128x256xf32, #tpu.memory_space<vmem>>, %arg5: memref<1x256xf32, #tpu.memory_space<vmem>>, %arg6: memref<8x128xf32, #tpu.memory_space<vmem>>, %arg7: memref<8x128xf32, #tpu.memory_space<vmem>>) attributes {dimension_semantics = [#tpu.dimension_semantics<parallel>], iteration_bounds = array<i64: 2>, scalar_prefetch = 0 : i64, scratch_operands = 0 : i64, tpu.core_type = #tpu.core_type<tc>, window_params = [{transform_indices = @transform_0, window_bounds = array<i64: 8, 128>}, {pipeline_mode = #tpu.pipeline_mode<synchronous>, transform_indices = @transform_1, window_bounds = array<i64: 128, 128>}, {pipeline_mode = #tpu.pipeline_mode<synchronous>, transform_indices = @transform_2, window_bounds = array<i64: 1, 128>}, {pipeline_mode = #tpu.pipeline_mode<synchronous>, transform_indices = @transform_3, window_bounds = array<i64: 128, 256>}, {pipeline_mode = #tpu.pipeline_mode<synchronous>, transform_indices = @transform_4, window_bounds = array<i64: 1, 256>}, {transform_indices = @transform_5, window_bounds = array<i64: 8, 128>}, {transform_indices = @transform_6, window_bounds = array<i64: 8, 128>}]} {
    %c0 = arith.constant 0 : index
    %c0_0 = arith.constant 0 : index
    %0 = vector.load %arg1[%c0, %c0_0] : memref<8x128xf32, #tpu.memory_space<vmem>>, vector<8x128xf32>
    %c0_1 = arith.constant 0 : index
    %c0_2 = arith.constant 0 : index
    %1 = vector.load %arg2[%c0_1, %c0_2] : memref<128x128xf32, #tpu.memory_space<vmem>>, vector<128x128xf32>
    %cst = arith.constant dense<0.000000e+00> : vector<8x128xf32>
    %2 = tpu.matmul %0, %1, %cst {dimension_numbers = #tpu.dot_dimension_numbers<[1], [0], [0], [1], [0, 0, 1, 1], [], []>} : vector<8x128xf32>, vector<128x128xf32>, vector<8x128xf32> -> vector<8x128xf32>
    %c0_3 = arith.constant 0 : index
    %c0_4 = arith.constant 0 : index
    %3 = vector.load %arg3[%c0_3, %c0_4] : memref<1x128xf32, #tpu.memory_space<vmem>>, vector<1x128xf32>
    %4 = vector.broadcast %3 : vector<1x128xf32> to vector<8x128xf32>
    %5 = arith.addf %2, %4 : vector<8x128xf32>
    %cst_5 = arith.constant 0.000000e+00 : f32
    %6 = vector.broadcast %cst_5 : f32 to vector<8x128xf32>
    %7 = arith.maximumf %5, %6 : vector<8x128xf32>
    %8 = math.absf %5 : vector<8x128xf32>
    %cst_6 = arith.constant 0.000000e+00 : f32
    %9 = vector.broadcast %cst_6 : f32 to vector<8x128xf32>
    %10 = arith.subf %9, %8 : vector<8x128xf32>
    %11 = math.exp %10 : vector<8x128xf32>
    %12 = math.log1p %11 : vector<8x128xf32>
    %13 = arith.addf %7, %12 : vector<8x128xf32>
    %c0_7 = arith.constant 0 : index
    %c0_8 = arith.constant 0 : index
    %14 = vector.load %arg4[%c0_7, %c0_8] : memref<128x256xf32, #tpu.memory_space<vmem>>, vector<128x256xf32>
    %cst_9 = arith.constant dense<0.000000e+00> : vector<8x256xf32>
    %15 = tpu.matmul %13, %14, %cst_9 {dimension_numbers = #tpu.dot_dimension_numbers<[1], [0], [0], [1], [0, 0, 1, 1], [], []>} : vector<8x128xf32>, vector<128x256xf32>, vector<8x256xf32> -> vector<8x256xf32>
    %c0_10 = arith.constant 0 : index
    %c0_11 = arith.constant 0 : index
    %16 = vector.load %arg5[%c0_10, %c0_11] : memref<1x256xf32, #tpu.memory_space<vmem>>, vector<1x256xf32>
    %17 = vector.broadcast %16 : vector<1x256xf32> to vector<8x256xf32>
    %18 = arith.addf %15, %17 : vector<8x256xf32>
    %19 = vector.extract_strided_slice %18 {offsets = [0, 0], sizes = [8, 128], strides = [1, 1]} : vector<8x256xf32> to vector<8x128xf32>
    %c0_12 = arith.constant 0 : index
    %c0_13 = arith.constant 0 : index
    %20 = vector.load %arg6[%c0_12, %c0_13] : memref<8x128xf32, #tpu.memory_space<vmem>>, vector<8x128xf32>
    tpu.vector_store %arg6[%c0_12, %c0_13], %19 {strides = array<i32>} : memref<8x128xf32, #tpu.memory_space<vmem>>, vector<8x128xf32>,
    %21 = vector.extract_strided_slice %18 {offsets = [0, 128], sizes = [8, 128], strides = [1, 1]} : vector<8x256xf32> to vector<8x128xf32>
    %22 = math.exp %21 : vector<8x128xf32>
    %c0_14 = arith.constant 0 : index
    %c0_15 = arith.constant 0 : index
    %23 = vector.load %arg7[%c0_14, %c0_15] : memref<8x128xf32, #tpu.memory_space<vmem>>, vector<8x128xf32>
    tpu.vector_store %arg7[%c0_14, %c0_15], %22 {strides = array<i32>} : memref<8x128xf32, #tpu.memory_space<vmem>>, vector<8x128xf32>,
    return
  }
  func.func @transform_0(%arg0: i32) -> (i32, i32) {
    %c0_i32 = arith.constant 0 : i32
    %c0_i32_0 = arith.constant 0 : i32
    return %arg0, %c0_i32 : i32, i32
  }
  func.func @transform_1(%arg0: i32) -> (i32, i32) {
    %c0_i32 = arith.constant 0 : i32
    %c0_i32_0 = arith.constant 0 : i32
    %c0_i32_1 = arith.constant 0 : i32
    return %c0_i32, %c0_i32_0 : i32, i32
  }
  func.func @transform_2(%arg0: i32) -> (i32, i32) {
    %c0_i32 = arith.constant 0 : i32
    %c0_i32_0 = arith.constant 0 : i32
    %c0_i32_1 = arith.constant 0 : i32
    return %c0_i32, %c0_i32_0 : i32, i32
  }
  func.func @transform_3(%arg0: i32) -> (i32, i32) {
    %c0_i32 = arith.constant 0 : i32
    %c0_i32_0 = arith.constant 0 : i32
    %c0_i32_1 = arith.constant 0 : i32
    return %c0_i32, %c0_i32_0 : i32, i32
  }
  func.func @transform_4(%arg0: i32) -> (i32, i32) {
    %c0_i32 = arith.constant 0 : i32
    %c0_i32_0 = arith.constant 0 : i32
    %c0_i32_1 = arith.constant 0 : i32
    return %c0_i32, %c0_i32_0 : i32, i32
  }
  func.func @transform_5(%arg0: i32) -> (i32, i32) {
    %c0_i32 = arith.constant 0 : i32
    %c0_i32_0 = arith.constant 0 : i32
    return %arg0, %c0_i32 : i32, i32
  }
  func.func @transform_6(%arg0: i32) -> (i32, i32) {
    %c0_i32 = arith.constant 0 : i32
    %c0_i32_0 = arith.constant 0 : i32
    return %arg0, %c0_i32 : i32, i32
  }
}

</mosaic_0001>

<llo_original>
// kernel: tpu_custom_call.1
$region0: #{tpu_custom_call.1}
  #allocation0 [shape = 'u32[]', space=smem, size = 0x4, offset = 0x4, fixed_abs, tag = 'smem constant byte address 0x4 - core index']
  #allocation1 [shape = 'u32[144,128]{1,0:T(1,128)}', space=vmem, size = 0x12000, scoped, tag = 'internal scratch']
  %s0 = inlined_call_operand.hbm [shape: f32[16,128], index: 0, kind: input, shape index: {}]
  %s1 = inlined_call_operand.hbm [shape: f32[128,128], index: 1, kind: input, shape index: {}]
  %s2 = inlined_call_operand.vmem [shape: f32[1,128], index: 2, kind: input, shape index: {}]
  %s3 = inlined_call_operand.hbm [shape: f32[128,256], index: 3, kind: input, shape index: {}]
  %s4 = inlined_call_operand.vmem [shape: f32[1,256], index: 4, kind: input, shape index: {}]
  %s5 = inlined_call_operand.hbm [shape: f32[16,128], index: 5, kind: output, shape index: {0}]
  %s6 = inlined_call_operand.hbm [shape: f32[16,128], index: 6, kind: output, shape index: {1}]
  %7 = xla_tuple %s5, %s6
  %s8 = sld [smem:[#allocation0]]
  $region73: #{tpu_custom_call.1} parent=0
    _
  %s10 = ssub.s32 1, %s8
  %s11 = scalar_select 0, %s10, %s8
  $region1: #{tpu_custom_call.1} parent=0
    #allocation2 [shape = 'u8[8192]{0}', space=vmem, size = 0x2000, scoped, tag = 'input window, operand 0']
    #allocation3 [shape = 's32[2]{0}', space=sflag, size = 0x8, scoped, tag = 'scoped memory for tpu_custom_call.1']
    #allocation4 [shape = 's32[2]{0}', space=sflag, size = 0x8, scoped, tag = 'scoped memory for tpu_custom_call.1']
    #allocation5 [shape = 'u8[65536]{0}', space=vmem, size = 0x10000, scoped, tag = 'input window, operand 1, single buffered']
    #allocation6 [shape = 's32[1]{0}', space=sflag, size = 0x4, scoped, tag = 'scoped memory for tpu_custom_call.1']
    #allocation7 [shape = 'u8[131072]{0}', space=vmem, size = 0x20000, scoped, tag = 'input window, operand 3, single buffered']
    #allocation8 [shape = 'u8[8192]{0}', space=vmem, size = 0x2000, scoped, tag = 'output window, operand 0']
    #allocation9 [shape = 'u8[8192]{0}', space=vmem, size = 0x2000, scoped, tag = 'output window, operand 1']
    #allocation10 [shape = 's32[2]{0}', space=sflag, size = 0x8, scoped, tag = 'scoped memory for tpu_custom_call.1']
    %12 = vsyncpa [#allocation3], 0
    %s13 = scalar_lea.sflag [#allocation3], 1
    %14 = vsyncpa %s13, 0
    %15 = vsyncpa [#allocation6], 0
    %16 = vsyncpa [#allocation4], 0
    %s17 = scalar_lea.sflag [#allocation4], 1
    %18 = vsyncpa %s17, 0
    %19 = vsyncpa [#allocation10], 0
    %s20 = scalar_lea.sflag [#allocation10], 1
    %21 = vsyncpa %s20, 0
    loop: start=0, step=1, limit=4
    $region2: #{tpu_custom_call.1} parent=1 // loop_pre_header
      _
    $region3: #{tpu_custom_call.1} parent=1 // loop_header
      %s23 = sphi 0, %s27
      %p24 = scmp.ge.s32.totalorder %s23, 4
      %s33 = sphi 0, %s35
      %s36 = sphi 0, %s33
      %s37 = sphi 0, %s36
      %s53 = sphi 0, %s37
      %s57 = sphi 0, %s57
      %s59 = sphi 0, %s57
      %s60 = sphi 0, %s59
      %s74 = sphi 0, %s60
      %s78 = sphi 0, %s78
      %s80 = sphi 0, %s78
      %s81 = sphi 0, %s80
      %s95 = sphi 0, %s81
      %s99 = sphi 0, %s99
      %s101 = sphi 0, %s99
      %s102 = sphi 0, %s101
      %s116 = sphi 0, %s102
      %s120 = sphi 0, %s120
      %s122 = sphi 0, %s120
      %s123 = sphi 0, %s122
      %s137 = sphi 0, %s123
      %s143 = sphi 0, %s145
      %s146 = sphi 0, %s143
      %s147 = sphi 0, %s146
      %s163 = sphi 0, %s147
      %s169 = sphi 0, %s171
      %s172 = sphi 0, %s169
      %s173 = sphi 0, %s172
      %s189 = sphi 0, %s173
    $region4: #{tpu_custom_call.1} parent=1 // loop_header_branch
      %26 = sbr.rel (%p24) target = $region8
    $region5: #{tpu_custom_call.1} parent=1 // loop_body
      %s28 = ssub.s32 %s23, 1
      %s29 = ssub.s32 %s23, 2
      %s30 = sadd.s32 %s23, 1
      %s31 = ssub.s32 %s23, %s30
      %p32 = scmp.eq.s32.totalorder %s31, 0
      %s34 = sadd.s32 %s33, 1
      %s35 = scalar_select %p32, %s33, %s34
      %p38 = pneg %p32
      %p39 = scmp.eq.s32.totalorder %s23, 1
      %p40 = por %p38, %p39
      %p41 = scmp.ne.s32.totalorder %s33, %s36
      %p42 = scmp.eq.s32.totalorder %s23, 0
      %p43 = por %p41, %p42
      %p44 = scmp.ne.s32.totalorder %s33, %s36
      %p45 = scmp.eq.s32.totalorder %s28, 1
      %p46 = por %p44, %p45
      %p47 = scmp.ne.s32.totalorder %s36, %s37
      %p48 = scmp.eq.s32.totalorder %s28, 0
      %p49 = por %p47, %p48
      %p50 = scmp.ne.s32.totalorder %s36, %s37
      %p51 = scmp.eq.s32.totalorder %s29, 1
      %p52 = por %p50, %p51
      %p54 = scmp.ne.s32.totalorder %s37, %s53
      %p55 = scmp.eq.s32.totalorder %s29, 0
      %p56 = por %p54, %p55
      %s58 = sadd.s32 %s57, 1
      %p61 = scmp.eq.s32.totalorder %s23, 1
      %p62 = scmp.ne.s32.totalorder %s57, %s59
      %p63 = scmp.eq.s32.totalorder %s23, 0
      %p64 = por %p62, %p63
      %p65 = scmp.ne.s32.totalorder %s57, %s59
      %p66 = scmp.eq.s32.totalorder %s28, 1
      %p67 = por %p65, %p66
      %p68 = scmp.ne.s32.totalorder %s59, %s60
      %p69 = scmp.eq.s32.totalorder %s28, 0
      %p70 = por %p68, %p69
      %p71 = scmp.ne.s32.totalorder %s59, %s60
      %p72 = scmp.eq.s32.totalorder %s29, 1
      %p73 = por %p71, %p72
      %p75 = scmp.ne.s32.totalorder %s60, %s74
      %p76 = scmp.eq.s32.totalorder %s29, 0
      %p77 = por %p75, %p76
      %s79 = sadd.s32 %s78, 1
      %p82 = scmp.eq.s32.totalorder %s23, 1
      %p83 = scmp.ne.s32.totalorder %s78, %s80
      %p84 = scmp.eq.s32.totalorder %s23, 0
      %p85 = por %p83, %p84
      %p86 = scmp.ne.s32.totalorder %s78, %s80
      %p87 = scmp.eq.s32.totalorder %s28, 1
      %p88 = por %p86, %p87
      %p89 = scmp.ne.s32.totalorder %s80, %s81
      %p90 = scmp.eq.s32.totalorder %s28, 0
      %p91 = por %p89, %p90
      %p92 = scmp.ne.s32.totalorder %s80, %s81
      %p93 = scmp.eq.s32.totalorder %s29, 1
      %p94 = por %p92, %p93
      %p96 = scmp.ne.s32.totalorder %s81, %s95
      %p97 = scmp.eq.s32.totalorder %s29, 0
      %p98 = por %p96, %p97
      %s100 = sadd.s32 %s99, 1
      %p103 = scmp.eq.s32.totalorder %s23, 1
      %p104 = scmp.ne.s32.totalorder %s99, %s101
      %p105 = scmp.eq.s32.totalorder %s23, 0
      %p106 = por %p104, %p105
      %p107 = scmp.ne.s32.totalorder %s99, %s101
      %p108 = scmp.eq.s32.totalorder %s28, 1
      %p109 = por %p107, %p108
      %p110 = scmp.ne.s32.totalorder %s101, %s102
      %p111 = scmp.eq.s32.totalorder %s28, 0
      %p112 = por %p110, %p111
      %p113 = scmp.ne.s32.totalorder %s101, %s102
      %p114 = scmp.eq.s32.totalorder %s29, 1
      %p115 = por %p113, %p114
      %p117 = scmp.ne.s32.totalorder %s102, %s116
      %p118 = scmp.eq.s32.totalorder %s29, 0
      %p119 = por %p117, %p118
      %s121 = sadd.s32 %s120, 1
      %p124 = scmp.eq.s32.totalorder %s23, 1
      %p125 = scmp.ne.s32.totalorder %s120, %s122
      %p126 = scmp.eq.s32.totalorder %s23, 0
      %p127 = por %p125, %p126
      %p128 = scmp.ne.s32.totalorder %s120, %s122
      %p129 = scmp.eq.s32.totalorder %s28, 1
      %p130 = por %p128, %p129
      %p131 = scmp.ne.s32.totalorder %s122, %s123
      %p132 = scmp.eq.s32.totalorder %s28, 0
      %p133 = por %p131, %p132
      %p134 = scmp.ne.s32.totalorder %s122, %s123
      %p135 = scmp.eq.s32.totalorder %s29, 1
      %p136 = por %p134, %p135
      %p138 = scmp.ne.s32.totalorder %s123, %s137
      %p139 = scmp.eq.s32.totalorder %s29, 0
      %p140 = por %p138, %p139
      %s141 = ssub.s32 %s23, %s30
      %p142 = scmp.eq.s32.totalorder %s141, 0
      %s144 = sadd.s32 %s143, 1
      %s145 = scalar_select %p142, %s143, %s144
      %p148 = pneg %p142
      %p149 = scmp.eq.s32.totalorder %s23, 1
      %p150 = por %p148, %p149
      %p151 = scmp.ne.s32.totalorder %s143, %s146
      %p152 = scmp.eq.s32.totalorder %s23, 0
      %p153 = por %p151, %p152
      %p154 = scmp.ne.s32.totalorder %s143, %s146
      %p155 = scmp.eq.s32.totalorder %s28, 1
      %p156 = por %p154, %p155
      %p157 = scmp.ne.s32.totalorder %s146, %s147
      %p158 = scmp.eq.s32.totalorder %s28, 0
      %p159 = por %p157, %p158
      %p160 = scmp.ne.s32.totalorder %s146, %s147
      %p161 = scmp.eq.s32.totalorder %s29, 1
      %p162 = por %p160, %p161
      %p164 = scmp.ne.s32.totalorder %s147, %s163
      %p165 = scmp.eq.s32.totalorder %s29, 0
      %p166 = por %p164, %p165
      %s167 = ssub.s32 %s23, %s30
      %p168 = scmp.eq.s32.totalorder %s167, 0
      %s170 = sadd.s32 %s169, 1
      %s171 = scalar_select %p168, %s169, %s170
      %p174 = pneg %p168
      %p175 = scmp.eq.s32.totalorder %s23, 1
      %p176 = por %p174, %p175
      %p177 = scmp.ne.s32.totalorder %s169, %s172
      %p178 = scmp.eq.s32.totalorder %s23, 0
      %p179 = por %p177, %p178
      %p180 = scmp.ne.s32.totalorder %s169, %s172
      %p181 = scmp.eq.s32.totalorder %s28, 1
      %p182 = por %p180, %p181
      %p183 = scmp.ne.s32.totalorder %s172, %s173
      %p184 = scmp.eq.s32.totalorder %s28, 0
      %p185 = por %p183, %p184
      %p186 = scmp.ne.s32.totalorder %s172, %s173
      %p187 = scmp.eq.s32.totalorder %s29, 1
      %p188 = por %p186, %p187
      %p190 = scmp.ne.s32.totalorder %s173, %s189
      %p191 = scmp.eq.s32.totalorder %s29, 0
      %p192 = por %p190, %p191
      %p193 = scmp.le.s32.totalorder 1, %s23
      %p194 = scmp.lt.s32.totalorder %s23, 3
      %p195 = pnand %p193, %p194
      %p196 = pneg %p195
      // Predicated region
      $region9: #{tpu_custom_call.1} parent=5 // pred_check
        _
      $region10: #{tpu_custom_call.1} parent=5 // pred_check_branch
        %198 = sbr.rel (%p195) target = $region12
      $region11: #{tpu_custom_call.1} parent=5 // pred_region
        %s199 = ssub.s32 %s23, 1
        // Predicated region
        $region13: #{tpu_custom_call.1} parent=11 // pred_check
          %p200 = pneg %p70
        $region14: #{tpu_custom_call.1} parent=11 // pred_check_branch
          %202 = sbr.rel (%p200) target = $region16
        $region15: #{tpu_custom_call.1} parent=11 // pred_region
          %s204 = ssub.s32 2048, 2048
          %205 = vsyncadd [#allocation6], %s204
          %s206 = sshll.u32 [#allocation5], 4
          %s207 = int_to_ptr.vmem [resolvable:$true] %s206
          %212 = dma.hbm_to_vmem [thread:$0]  %s1, 2048, %s207, [#allocation6], 128, 128, 8
        $region16: #{tpu_custom_call.1} parent=11 // pred_fallthru
          _
        // Predicated region
        $region17: #{tpu_custom_call.1} parent=11 // pred_check
          %p213 = pneg %p91
        $region18: #{tpu_custom_call.1} parent=11 // pred_check_branch
          %215 = sbr.rel (%p213) target = $region20
        $region19: #{tpu_custom_call.1} parent=11 // pred_region
          _
        $region20: #{tpu_custom_call.1} parent=11 // pred_fallthru
          _
        // Predicated region
        $region21: #{tpu_custom_call.1} parent=11 // pred_check
          %p216 = pneg %p112
        $region22: #{tpu_custom_call.1} parent=11 // pred_check_branch
          %218 = sbr.rel (%p216) target = $region24
        $region23: #{tpu_custom_call.1} parent=11 // pred_region
          %s220 = ssub.s32 4096, 4096
          %221 = vsyncadd [#allocation6], %s220
          %s222 = sshll.u32 [#allocation7], 4
          %s223 = int_to_ptr.vmem [resolvable:$true] %s222
          %228 = dma.hbm_to_vmem [thread:$0]  %s3, 4096, %s223, [#allocation6], 256, 256, 16
        $region24: #{tpu_custom_call.1} parent=11 // pred_fallthru
          _
        // Predicated region
        $region25: #{tpu_custom_call.1} parent=11 // pred_check
          %p229 = pneg %p133
        $region26: #{tpu_custom_call.1} parent=11 // pred_check_branch
          %231 = sbr.rel (%p229) target = $region28
        $region27: #{tpu_custom_call.1} parent=11 // pred_region
          _
        $region28: #{tpu_custom_call.1} parent=11 // pred_fallthru
          _
      $region12: #{tpu_custom_call.1} parent=5 // pred_fallthru
        _
      %p232 = scmp.lt.s32.totalorder %s23, 2
      // Predicated region
      $region29: #{tpu_custom_call.1} parent=5 // pred_check
        %p233 = pneg %p232
      $region30: #{tpu_custom_call.1} parent=5 // pred_check_branch
        %235 = sbr.rel (%p233) target = $region32
      $region31: #{tpu_custom_call.1} parent=5 // pred_region
        // Predicated region
        $region33: #{tpu_custom_call.1} parent=31 // pred_check
          %p236 = pneg %p43
        $region34: #{tpu_custom_call.1} parent=31 // pred_check_branch
          %238 = sbr.rel (%p236) target = $region36
        $region35: #{tpu_custom_call.1} parent=31 // pred_region
          %s239 = sand.u32 %s33, 1
          %s240 = scalar_lea.sflag [#allocation3], %s239
          %s241 = sand.u32 %s33, 1
          %s242 = smul.addr %s241, 8
          %s243 = scalar_lea.vmem [#allocation2], %s242
          %s245 = ssub.s32 128, 128
          %246 = vsyncadd %s240, %s245
          %s247 = smul.addr %s23, 128
          %s248 = scalar_lea.hbm %s0, %s247
          %s250 = sshll.u32 %s243, 4
          %s251 = int_to_ptr.vmem [resolvable:$true] %s250
          %253 = dma.hbm_to_vmem [thread:$0]  %s248, 128, %s251, %s240
        $region36: #{tpu_custom_call.1} parent=31 // pred_fallthru
          _
      $region32: #{tpu_custom_call.1} parent=5 // pred_fallthru
        _
      %p254 = scmp.le.s32.totalorder 1, %s23
      %p255 = scmp.lt.s32.totalorder %s23, 3
      %p256 = pnand %p254, %p255
      %p257 = pneg %p256
      // Predicated region
      $region37: #{tpu_custom_call.1} parent=5 // pred_check
        _
      $region38: #{tpu_custom_call.1} parent=5 // pred_check_branch
        %259 = sbr.rel (%p256) target = $region40
      $region39: #{tpu_custom_call.1} parent=5 // pred_region
        %s260 = ssub.s32 %s23, 1
        %s261 = sand.u32 %s36, 1
        %s262 = scalar_lea.sflag [#allocation3], %s261
        %s263 = sand.u32 %s36, 1
        %s264 = smul.addr %s263, 8
        %s265 = scalar_lea.vmem [#allocation2], %s264
        // Predicated region
        $region41: #{tpu_custom_call.1} parent=39 // pred_check
          %p266 = pneg %p49
        $region42: #{tpu_custom_call.1} parent=39 // pred_check_branch
          %268 = sbr.rel (%p266) target = $region44
        $region43: #{tpu_custom_call.1} parent=39 // pred_region
          %269 = dma.done %s262, 128
        $region44: #{tpu_custom_call.1} parent=39 // pred_fallthru
          _
        // Predicated region
        $region45: #{tpu_custom_call.1} parent=39 // pred_check
          %p270 = pneg %p70
        $region46: #{tpu_custom_call.1} parent=39 // pred_check_branch
          %272 = sbr.rel (%p270) target = $region48
        $region47: #{tpu_custom_call.1} parent=39 // pred_region
          %273 = dma.done [#allocation6], 2048
        $region48: #{tpu_custom_call.1} parent=39 // pred_fallthru
          _
        // Predicated region
        $region49: #{tpu_custom_call.1} parent=39 // pred_check
          %p274 = pneg %p112
        $region50: #{tpu_custom_call.1} parent=39 // pred_check_branch
          %276 = sbr.rel (%p274) target = $region52
        $region51: #{tpu_custom_call.1} parent=39 // pred_region
          %277 = dma.done [#allocation6], 4096
        $region52: #{tpu_custom_call.1} parent=39 // pred_fallthru
          _
        %s278 = sand.u32 %s36, 1
        %s279 = scalar_lea.sflag [#allocation3], %s278
        %s280 = sand.u32 %s36, 1
        %s281 = smul.addr %s280, 8
        %s282 = scalar_lea.vmem [#allocation2], %s281
        %p283 = pneg %p49
        %p284 = pneg %p46
        %p285 = pneg %p70
        %p286 = pneg %p67
        %p287 = pneg %p91
        %p288 = pneg %p88
        %p289 = pneg %p112
        %p290 = pneg %p109
        %p291 = pneg %p133
        %p292 = pneg %p130
        %p293 = pneg %p159
        %p294 = pneg %p156
        %s295 = sand.u32 %s146, 1
        %s296 = scalar_lea.sflag [#allocation4], %s295
        %s297 = sand.u32 %s146, 1
        %s298 = smul.addr %s297, 8
        %s299 = scalar_lea.vmem [#allocation8], %s298
        %p300 = pneg %p185
        %p301 = pneg %p182
        %s302 = sand.u32 %s172, 1
        %s303 = scalar_lea.sflag [#allocation10], %s302
        %s304 = sand.u32 %s172, 1
        %s305 = smul.addr %s304, 8
        %s306 = scalar_lea.vmem [#allocation9], %s305
        %v307 = vld [vmem:[%s265] sm:$0xff]
        %v308 = vld [vmem:[#allocation5] sm:$0xff]
        %v309 = vld [vmem:[#allocation5 + $0x8] sm:$0xff]
        %v310 = vld [vmem:[#allocation5 + $0x10] sm:$0xff]
        %v311 = vld [vmem:[#allocation5 + $0x18] sm:$0xff]
        %v312 = vld [vmem:[#allocation5 + $0x20] sm:$0xff]
        %v313 = vld [vmem:[#allocation5 + $0x28] sm:$0xff]
        %v314 = vld [vmem:[#allocation5 + $0x30] sm:$0xff]
        %v315 = vld [vmem:[#allocation5 + $0x38] sm:$0xff]
        %v316 = vld [vmem:[#allocation5 + $0x40] sm:$0xff]
        %v317 = vld [vmem:[#allocation5 + $0x48] sm:$0xff]
        %v318 = vld [vmem:[#allocation5 + $0x50] sm:$0xff]
        %v319 = vld [vmem:[#allocation5 + $0x58] sm:$0xff]
        %v320 = vld [vmem:[#allocation5 + $0x60] sm:$0xff]
        %v321 = vld [vmem:[#allocation5 + $0x68] sm:$0xff]
        %v322 = vld [vmem:[#allocation5 + $0x70] sm:$0xff]
        %v323 = vld [vmem:[#allocation5 + $0x78] sm:$0xff]
        %v324 = vld [vmem:[%s2] sm:$0x1]
        %v326 = vlaneseq
        %v327 = vshrl.u32 %v326, 7
        %v328 = vsub.s32 0, %v327
        %v329 = vrot.slane %v324, %v328
        %331 = vmatprep.subr.mxu0 0.0
        %332 = vmatpush1.msra.mxu0 %v308
        %333 = vmatprep.subr.mxu0 0.0
        %334 = vmatpush1.msra.mxu0 %v309
        %335 = vmatprep.subr.mxu0 0.0
        %336 = vmatpush1.msra.mxu0 %v310
        %337 = vmatprep.subr.mxu0 0.0
        %338 = vmatpush1.msra.mxu0 %v311
        %339 = vmatprep.subr.mxu0 0.0
        %340 = vmatpush1.msra.mxu0 %v312
        %341 = vmatprep.subr.mxu0 0.0
        %342 = vmatpush1.msra.mxu0 %v313
        %343 = vmatprep.subr.mxu0 0.0
        %344 = vmatpush1.msra.mxu0 %v314
        %345 = vmatprep.subr.mxu0 0.0
        %346 = vmatpush1.msra.mxu0 %v315
        %347 = vmatprep.subr.mxu0 0.0
        %348 = vmatpush1.msra.mxu0 %v316
        %349 = vmatprep.subr.mxu0 0.0
        %350 = vmatpush1.msra.mxu0 %v317
        %351 = vmatprep.subr.mxu0 0.0
        %352 = vmatpush1.msra.mxu0 %v318
        %353 = vmatprep.subr.mxu0 0.0
        %354 = vmatpush1.msra.mxu0 %v319
        %355 = vmatprep.subr.mxu0 0.0
        %356 = vmatpush1.msra.mxu0 %v320
        %357 = vmatprep.subr.mxu0 0.0
        %358 = vmatpush1.msra.mxu0 %v321
        %359 = vmatprep.subr.mxu0 0.0
        %360 = vmatpush1.msra.mxu0 %v322
        %361 = vmatprep.subr.mxu0 0.0
        %362 = vmatpush1.msra.mxu0 %v323
        %363 = vmatprep.subr.mxu0 0.0
        %364 = vmatpush1.msra.mxu0 0.0
        %365 = vmatprep.subr.mxu0 0.0
        %366 = vmatpush1.msra.mxu0 0.0
        %367 = vmatprep.subr.mxu0 0.0
        %368 = vmatpush1.msra.mxu0 0.0
        %369 = vmatprep.subr.mxu0 0.0
        %370 = vmatpush1.msra.mxu0 0.0
        %371 = vmatprep.subr.mxu0 0.0
        %372 = vmatpush1.msra.mxu0 0.0
        %373 = vmatprep.subr.mxu0 0.0
        %374 = vmatpush1.msra.mxu0 0.0
        %375 = vmatprep.subr.mxu0 0.0
        %376 = vmatpush1.msra.mxu0 0.0
        %377 = vmatprep.subr.mxu0 0.0
        %378 = vmatpush1.msra.mxu0 0.0
        %379 = vmatprep.subr.mxu0 0.0
        %380 = vmatpush1.msra.mxu0 0.0
        %381 = vmatprep.subr.mxu0 0.0
        %382 = vmatpush1.msra.mxu0 0.0
        %383 = vmatprep.subr.mxu0 0.0
        %384 = vmatpush1.msra.mxu0 0.0
        %385 = vmatprep.subr.mxu0 0.0
        %386 = vmatpush1.msra.mxu0 0.0
        %387 = vmatprep.subr.mxu0 0.0
        %388 = vmatpush1.msra.mxu0 0.0
        %389 = vmatprep.subr.mxu0 0.0
        %390 = vmatpush1.msra.mxu0 0.0
        %391 = vmatprep.subr.mxu0 0.0
        %392 = vmatpush1.msra.mxu0 0.0
        %393 = vmatprep.subr.mxu0 0.0
        %394 = vmatpush1.msra.mxu0 0.0
        %395 = vmatprep.mubr.f32.mxu0 0.0
        %396 = vmatmul.mubr.f32.gmra.mrb[0].mxu0 %v307
        %v397 = vpop.f32.mrb[0].mxu0
        %v398 = vadd.f32 %v329, %v397
        %v399 = vpop.f32.mrb[0].mxu0
        %400 = vdwg.mxu0
        %v401 = vmax.f32 %v398, 0.0
        %v402 = vand.u32 2147483647, %v398
        %v403 = vsub.f32 0.0, %v402
        %v404 = vmul.f32 %v403, 1.442695
        %v405 = vpow.pop %v404
        %v406 = vadd.f32 %v405, 1.0
        %v407 = vlog2.pop %v406
        %v408 = vmul.f32 %v407, 0.6931472
        %v409 = vmul.f32 -0.5, %v405
        %v410 = vadd.f32 %v409, 1.0
        %v411 = vmul.f32 %v410, %v405
        %v412 = vand.u32 2147483647, %v405
        %vm413 = vcmp.lt.f32.partialorder %v412, 0.0004427343
        %v414 = vsel %vm413, %v411, %v408
        %v415 = vadd.f32 %v401, %v414
        %v416 = vld [vmem:[#allocation7] sm:$0xff]
        %v417 = vld [vmem:[#allocation7 + $0x8] sm:$0xff]
        %v418 = vld [vmem:[#allocation7 + $0x10] sm:$0xff]
        %v419 = vld [vmem:[#allocation7 + $0x18] sm:$0xff]
        %v420 = vld [vmem:[#allocation7 + $0x20] sm:$0xff]
        %v421 = vld [vmem:[#allocation7 + $0x28] sm:$0xff]
        %v422 = vld [vmem:[#allocation7 + $0x30] sm:$0xff]
        %v423 = vld [vmem:[#allocation7 + $0x38] sm:$0xff]
        %v424 = vld [vmem:[#allocation7 + $0x40] sm:$0xff]
        %v425 = vld [vmem:[#allocation7 + $0x48] sm:$0xff]
        %v426 = vld [vmem:[#allocation7 + $0x50] sm:$0xff]
        %v427 = vld [vmem:[#allocation7 + $0x58] sm:$0xff]
        %v428 = vld [vmem:[#allocation7 + $0x60] sm:$0xff]
        %v429 = vld [vmem:[#allocation7 + $0x68] sm:$0xff]
        %v430 = vld [vmem:[#allocation7 + $0x70] sm:$0xff]
        %v431 = vld [vmem:[#allocation7 + $0x78] sm:$0xff]
        %v432 = vld [vmem:[#allocation7 + $0x80] sm:$0xff]
        %v433 = vld [vmem:[#allocation7 + $0x88] sm:$0xff]
        %v434 = vld [vmem:[#allocation7 + $0x90] sm:$0xff]
        %v435 = vld [vmem:[#allocation7 + $0x98] sm:$0xff]
        %v436 = vld [vmem:[#allocation7 + $0xa0] sm:$0xff]
        %v437 = vld [vmem:[#allocation7 + $0xa8] sm:$0xff]
        %v438 = vld [vmem:[#allocation7 + $0xb0] sm:$0xff]
        %v439 = vld [vmem:[#allocation7 + $0xb8] sm:$0xff]
        %v440 = vld [vmem:[#allocation7 + $0xc0] sm:$0xff]
        %v441 = vld [vmem:[#allocation7 + $0xc8] sm:$0xff]
        %v442 = vld [vmem:[#allocation7 + $0xd0] sm:$0xff]
        %v443 = vld [vmem:[#allocation7 + $0xd8] sm:$0xff]
        %v444 = vld [vmem:[#allocation7 + $0xe0] sm:$0xff]
        %v445 = vld [vmem:[#allocation7 + $0xe8] sm:$0xff]
        %v446 = vld [vmem:[#allocation7 + $0xf0] sm:$0xff]
        %v447 = vld [vmem:[#allocation7 + $0xf8] sm:$0xff]
        %v448 = vld [vmem:[%s4] sm:$0x3]
        %v450 = vlaneseq
        %v451 = vshrl.u32 %v450, 7
        %v452 = vsub.s32 0, %v451
        %v453 = vrot.slane %v448, %v452
        %v454 = vlaneseq
        %v455 = vshrl.u32 %v454, 7
        %v456 = vsub.s32 1, %v455
        %v457 = vrot.slane %v448, %v456
        %460 = vmatprep.subr.mxu0 %v417
        %461 = vmatpush1.msra.mxu0 %v416
        %462 = vmatprep.subr.mxu0 %v419
        %463 = vmatpush1.msra.mxu0 %v418
        %464 = vmatprep.subr.mxu0 %v421
        %465 = vmatpush1.msra.mxu0 %v420
        %466 = vmatprep.subr.mxu0 %v423
        %467 = vmatpush1.msra.mxu0 %v422
        %468 = vmatprep.subr.mxu0 %v425
        %469 = vmatpush1.msra.mxu0 %v424
        %470 = vmatprep.subr.mxu0 %v427
        %471 = vmatpush1.msra.mxu0 %v426
        %472 = vmatprep.subr.mxu0 %v429
        %473 = vmatpush1.msra.mxu0 %v428
        %474 = vmatprep.subr.mxu0 %v431
        %475 = vmatpush1.msra.mxu0 %v430
        %476 = vmatprep.subr.mxu0 %v433
        %477 = vmatpush1.msra.mxu0 %v432
        %478 = vmatprep.subr.mxu0 %v435
        %479 = vmatpush1.msra.mxu0 %v434
        %480 = vmatprep.subr.mxu0 %v437
        %481 = vmatpush1.msra.mxu0 %v436
        %482 = vmatprep.subr.mxu0 %v439
        %483 = vmatpush1.msra.mxu0 %v438
        %484 = vmatprep.subr.mxu0 %v441
        %485 = vmatpush1.msra.mxu0 %v440
        %486 = vmatprep.subr.mxu0 %v443
        %487 = vmatpush1.msra.mxu0 %v442
        %488 = vmatprep.subr.mxu0 %v445
        %489 = vmatpush1.msra.mxu0 %v444
        %490 = vmatprep.subr.mxu0 %v447
        %491 = vmatpush1.msra.mxu0 %v446
        %492 = vmatprep.subr.mxu0 0.0
        %493 = vmatpush1.msra.mxu0 0.0
        %494 = vmatprep.subr.mxu0 0.0
        %495 = vmatpush1.msra.mxu0 0.0
        %496 = vmatprep.subr.mxu0 0.0
        %497 = vmatpush1.msra.mxu0 0.0
        %498 = vmatprep.subr.mxu0 0.0
        %499 = vmatpush1.msra.mxu0 0.0
        %500 = vmatprep.subr.mxu0 0.0
        %501 = vmatpush1.msra.mxu0 0.0
        %502 = vmatprep.subr.mxu0 0.0
        %503 = vmatpush1.msra.mxu0 0.0
        %504 = vmatprep.subr.mxu0 0.0
        %505 = vmatpush1.msra.mxu0 0.0
        %506 = vmatprep.subr.mxu0 0.0
        %507 = vmatpush1.msra.mxu0 0.0
        %508 = vmatprep.subr.mxu0 0.0
        %509 = vmatpush1.msra.mxu0 0.0
        %510 = vmatprep.subr.mxu0 0.0
        %511 = vmatpush1.msra.mxu0 0.0
        %512 = vmatprep.subr.mxu0 0.0
        %513 = vmatpush1.msra.mxu0 0.0
        %514 = vmatprep.subr.mxu0 0.0
        %515 = vmatpush1.msra.mxu0 0.0
        %516 = vmatprep.subr.mxu0 0.0
        %517 = vmatpush1.msra.mxu0 0.0
        %518 = vmatprep.subr.mxu0 0.0
        %519 = vmatpush1.msra.mxu0 0.0
        %520 = vmatprep.subr.mxu0 0.0
        %521 = vmatpush1.msra.mxu0 0.0
        %522 = vmatprep.subr.mxu0 0.0
        %523 = vmatpush1.msra.mxu0 0.0
        %524 = vmatprep.mubr.f32.mxu0 0.0
        %525 = vmatmul.mubr.f32.gmra.mrb[0].mxu0 %v415
        %v526 = vpop.f32.mrb[0].mxu0
        %v527 = vadd.f32 %v453, %v526
        %v528 = vpop.f32.mrb[0].mxu0
        %v529 = vadd.f32 %v457, %v528
        %530 = vdwg.mxu0
        %531 = vst [vmem:[%s299] sm:$0xff] %v527
        %v532 = vmul.f32 %v529, 1.442695
        %v533 = vpow.pop %v532
        %534 = vst [vmem:[%s306] sm:$0xff] %v533
        %s535 = sand.u32 %s146, 1
        %s536 = scalar_lea.sflag [#allocation4], %s535
        %s537 = sand.u32 %s146, 1
        %s538 = smul.addr %s537, 8
        %s539 = scalar_lea.vmem [#allocation8], %s538
        %s540 = sand.u32 %s172, 1
        %s541 = scalar_lea.sflag [#allocation10], %s540
        %s542 = sand.u32 %s172, 1
        %s543 = smul.addr %s542, 8
        %s544 = scalar_lea.vmem [#allocation9], %s543
        // Predicated region
        $region53: #{tpu_custom_call.1} parent=39 // pred_check
          %p545 = pneg %p156
        $region54: #{tpu_custom_call.1} parent=39 // pred_check_branch
          %547 = sbr.rel (%p545) target = $region56
        $region55: #{tpu_custom_call.1} parent=39 // pred_region
          %s549 = ssub.s32 128, 128
          %550 = vsyncadd %s536, %s549
          %s551 = smul.addr %s28, 128
          %s552 = scalar_lea.hbm %s5, %s551
          %s554 = sshll.u32 %s539, 4
          %s555 = int_to_ptr.vmem [resolvable:$true] %s554
          %557 = dma.vmem_to_hbm [thread:$0]  %s555, 128, %s552, %s536
        $region56: #{tpu_custom_call.1} parent=39 // pred_fallthru
          _
        // Predicated region
        $region57: #{tpu_custom_call.1} parent=39 // pred_check
          %p558 = pneg %p182
        $region58: #{tpu_custom_call.1} parent=39 // pred_check_branch
          %560 = sbr.rel (%p558) target = $region60
        $region59: #{tpu_custom_call.1} parent=39 // pred_region
          %s562 = ssub.s32 128, 128
          %563 = vsyncadd %s541, %s562
          %s564 = smul.addr %s28, 128
          %s565 = scalar_lea.hbm %s6, %s564
          %s567 = sshll.u32 %s544, 4
          %s568 = int_to_ptr.vmem [resolvable:$true] %s567
          %570 = dma.vmem_to_hbm [thread:$0]  %s568, 128, %s565, %s541
        $region60: #{tpu_custom_call.1} parent=39 // pred_fallthru
          _
      $region40: #{tpu_custom_call.1} parent=5 // pred_fallthru
        _
      %p571 = scmp.le.s32.totalorder 2, %s23
      // Predicated region
      $region61: #{tpu_custom_call.1} parent=5 // pred_check
        %p572 = pneg %p571
      $region62: #{tpu_custom_call.1} parent=5 // pred_check_branch
        %574 = sbr.rel (%p572) target = $region64
      $region63: #{tpu_custom_call.1} parent=5 // pred_region
        %s575 = ssub.s32 %s23, 2
        // Predicated region
        $region65: #{tpu_custom_call.1} parent=63 // pred_check
          %p576 = pneg %p162
        $region66: #{tpu_custom_call.1} parent=63 // pred_check_branch
          %578 = sbr.rel (%p576) target = $region68
        $region67: #{tpu_custom_call.1} parent=63 // pred_region
          %s579 = sand.u32 %s147, 1
          %s580 = scalar_lea.sflag [#allocation4], %s579
          %s581 = sand.u32 %s147, 1
          %s582 = smul.addr %s581, 8
          %s583 = scalar_lea.vmem [#allocation8], %s582
          %584 = dma.done %s580, 128
        $region68: #{tpu_custom_call.1} parent=63 // pred_fallthru
          _
        // Predicated region
        $region69: #{tpu_custom_call.1} parent=63 // pred_check
          %p585 = pneg %p188
        $region70: #{tpu_custom_call.1} parent=63 // pred_check_branch
          %587 = sbr.rel (%p585) target = $region72
        $region71: #{tpu_custom_call.1} parent=63 // pred_region
          %s588 = sand.u32 %s173, 1
          %s589 = scalar_lea.sflag [#allocation10], %s588
          %s590 = sand.u32 %s173, 1
          %s591 = smul.addr %s590, 8
          %s592 = scalar_lea.vmem [#allocation9], %s591
          %593 = dma.done %s589, 128
        $region72: #{tpu_custom_call.1} parent=63 // pred_fallthru
          _
      $region64: #{tpu_custom_call.1} parent=5 // pred_fallthru
        _
    $region6: #{tpu_custom_call.1} parent=1 // loop_footer
      %s27 = sadd.s32 1, %s23
    $region7: #{tpu_custom_call.1} parent=1 // loop_footer_branch
      %22 = sbr.rel target = $region3
    $region8: #{tpu_custom_call.1} parent=1 // loop_exit
      _
    %594 = vsyncpa [#allocation3], 1
    %s595 = scalar_lea.sflag [#allocation3], 1
    %596 = vsyncpa %s595, 1
    %597 = vsyncpa [#allocation6], 1
    %598 = vsyncpa [#allocation4], 1
    %s599 = scalar_lea.sflag [#allocation4], 1
    %600 = vsyncpa %s599, 1
    %601 = vsyncpa [#allocation10], 1
    %s602 = scalar_lea.sflag [#allocation10], 1
    %603 = vsyncpa %s602, 1

</llo_original>
